<compile_context>
chip_gen: v6e
topology: v6e:2x2x1
jax: 0.10.0
libtpu: 0.0.40
codegen_flags: <defaults>
</compile_context>

<pallas_src>
import numpy as np
import jax
import jax.numpy as jnp
from jax.experimental import pallas as pl
from jax.experimental.pallas import tpu as pltpu


def _delivery_cnn_kernel(x_ref, wc_ref, bc_ref, w1_ref, b1_ref,
                         w2_ref, b2_ref, wo_ref, bo_ref, out_ref):
    # In-kernel bf16 cast of the (TB, Cin*L) input tile (no wrapper XLA op).
    xb = x_ref[...].astype(jnp.bfloat16)

    # conv1 (k=3, pad=1) + im2col folded into one block-banded matmul -> (TB, L*32)
    h = jnp.dot(xb, wc_ref[...], preferred_element_type=jnp.float32) + bc_ref[...]
    h = jnp.maximum(h, 0.0)                     # ReLU; Dropout(0.1) = identity (eval)

    # fc1 over the flattened (position-major) conv output, single MXU call.
    z1 = jnp.dot(h.astype(jnp.bfloat16), w1_ref[...],
                 preferred_element_type=jnp.float32) + b1_ref[...]
    z1 = jnp.maximum(z1, 0.0)                   # ReLU; Dropout(0.1) = identity (eval)

    # fc2
    z2 = jnp.dot(z1.astype(jnp.bfloat16), w2_ref[...],
                 preferred_element_type=jnp.float32) + b2_ref[...]
    z2 = jnp.maximum(z2, 0.0)                   # ReLU

    # Output layer: lane-dense (128-wide padded) bf16 store -- halves the
    # dominant HBM writeback vs f32.
    logits = jnp.dot(z2.astype(jnp.bfloat16), wo_ref[...],
                     preferred_element_type=jnp.float32) + bo_ref[...]
    out_ref[...] = logits.astype(out_ref.dtype)


def delivery_notification_cnn(x, kernel_params, num_classes):
    """x: (B, Cin, L) float32, NCL like PyTorch Conv1d.  Returns (B, num_classes) bf16."""
    B, Cin, L = x.shape
    wc, bc, w1, b1, w2, b2, wo, bo = kernel_params
    OUT_PAD = wo.shape[1]

    # Wrapper-side glue is just a free reshape view; the bf16 cast is in-kernel.
    xflat = x.reshape(B, Cin * L)

    # Batch tiling:
    #   B <= 16   -> single tile (latency regime; splitting only adds overhead).
    #   otherwise -> at least 2 tiles of 8-aligned rows so ("parallel",) can
    #                shard them across both v7x TensorCores; cap 4096 rows
    #                (per-tile VMEM ~2 MiB, far under the 32 MiB scoped limit)
    #                to amortize per-grid-step overhead for large B.
    if B <= 16:
        TB = B
    else:
        TB = min(4096, 8 * pl.cdiv(pl.cdiv(B, 2), 8))
    grid = (pl.cdiv(B, TB),)

    def resident(shape):
        # Grid-invariant block: stays VMEM-resident across all batch tiles.
        # (~30 KiB of weights total at L=5, so default double-buffering is
        # harmless; for large L use pipeline_mode=pl.Buffered(1) here to halve
        # resident-weight VMEM on v7x.)
        return pl.BlockSpec(shape, lambda i: (0, 0))

    flops = 2 * B * ((Cin * L) * (L * 32) + (L * 32) * 50 + 50 * 50 + 50 * OUT_PAD)
    bytes_accessed = (int(xflat.size) * 4
                      + sum(int(p.size) * p.dtype.itemsize for p in kernel_params)
                      + B * OUT_PAD * 2)

    out_pad = pl.pallas_call(
        _delivery_cnn_kernel,
        out_shape=jax.ShapeDtypeStruct((B, OUT_PAD), jnp.bfloat16),
        grid_spec=pltpu.PrefetchScalarGridSpec(
            num_scalar_prefetch=0,
            grid=grid,
            in_specs=[
                pl.BlockSpec((TB, Cin * L), lambda i: (i, 0)),   # batch-tiled input
                resident(wc.shape), resident(bc.shape),
                resident(w1.shape), resident(b1.shape),
                resident(w2.shape), resident(b2.shape),
                resident(wo.shape), resident(bo.shape),
            ],
            out_specs=pl.BlockSpec((TB, OUT_PAD), lambda i: (i, 0)),
        ),
        compiler_params=pltpu.CompilerParams(
            dimension_semantics=("parallel",),        # shard batch tiles across TCs
            vmem_limit_bytes=32 * 1024 * 1024),
        cost_estimate=pl.CostEstimate(
            flops=int(flops), transcendentals=0,
            bytes_accessed=int(bytes_accessed)),
    )(xflat, wc, bc, w1, b1, w2, b2, wo, bo)

    # Padded columns are exactly zero; slice off the class padding (cheap, bf16).
    return out_pad[:, :num_classes]


def init_params(key, input_features, L, num_classes):
    """Deterministic synthetic parameters in PyTorch layout, plus kernel layout."""
    K, Cout, H1 = 3, 32, 50
    ks = jax.random.split(key, 8)
    conv_w = jax.random.normal(ks[0], (Cout, input_features, K), jnp.float32) * 0.1
    conv_b = jax.random.normal(ks[1], (Cout,), jnp.float32) * 0.1
    fc1_w = jax.random.normal(ks[2], (H1, Cout * L), jnp.float32) * 0.1   # in idx = c*L + l
    fc1_b = jax.random.normal(ks[3], (H1,), jnp.float32) * 0.1
    fc2_w = jax.random.normal(ks[4], (H1, H1), jnp.float32) * 0.1
    fc2_b = jax.random.normal(ks[5], (H1,), jnp.float32) * 0.1
    out_w = jax.random.normal(ks[6], (num_classes, H1), jnp.float32) * 0.1
    out_b = jax.random.normal(ks[7], (num_classes,), jnp.float32) * 0.1

    cw = np.asarray(conv_w)
    # Conv1d(k=3, pad=1) with im2col folded into a block-banded weight:
    #   wc_big[ci*L + l', l*32 + c] = conv_w[c, ci, l' - l + 1] when 0 <= l'-l+1 < 3.
    wc_big = np.zeros((input_features * L, L * Cout), np.float32)
    for l in range(L):
        for k in range(K):
            lp = l + k - 1
            if 0 <= lp < L:
                for ci in range(input_features):
                    wc_big[ci * L + lp, l * Cout:(l + 1) * Cout] = cw[:, ci, k]
    bc_big = np.tile(np.asarray(conv_b), L).reshape(1, L * Cout)

    # PyTorch flattens (B, 32, L) channel-major (idx = c*L + l); the kernel's conv
    # output is position-major (idx = l*32 + c), so w1flat[l*32+c, j] = fc1_w[j, c*L+l].
    w1flat = np.transpose(np.asarray(fc1_w).reshape(H1, Cout, L),
                          (2, 1, 0)).reshape(L * Cout, H1)
    b1 = np.asarray(fc1_b).reshape(1, H1)
    w2 = np.asarray(fc2_w).T
    b2 = np.asarray(fc2_b).reshape(1, H1)

    # Lane-dense output: pad the class axis to 128 (padded columns are zero).
    OUT_PAD = 128
    wo_pad = np.zeros((H1, OUT_PAD), np.float32)
    wo_pad[:, :num_classes] = np.asarray(out_w).T
    bo_pad = np.zeros((1, OUT_PAD), np.float32)
    bo_pad[:, :num_classes] = np.asarray(out_b)

    kernel_params = (
        jnp.asarray(wc_big, jnp.bfloat16),   # MXU inputs in bf16 (f32 accumulation)
        jnp.asarray(bc_big, jnp.float32),
        jnp.asarray(w1flat, jnp.bfloat16),
        jnp.asarray(b1, jnp.float32),
        jnp.asarray(w2, jnp.bfloat16),
        jnp.asarray(b2, jnp.float32),
        jnp.asarray(wo_pad, jnp.bfloat16),
        jnp.asarray(bo_pad, jnp.float32),
    )
    torch_params = (conv_w, conv_b, fc1_w, fc1_b, fc2_w, fc2_b, out_w, out_b)
    return kernel_params, torch_params


def torch_semantics_reference(x, torch_params):
    """NumPy replica of the PyTorch forward (eval mode) for verification."""
    conv_w, conv_b, fc1_w, fc1_b, fc2_w, fc2_b, out_w, out_b = [
        np.asarray(p, np.float32) for p in torch_params]
    x = np.asarray(x, np.float32)
    B, Cin, L = x.shape
    Cout = conv_w.shape[0]
    x_pad = np.pad(x, ((0, 0), (0, 0), (1, 1)))
    h = np.zeros((B, Cout, L), np.float32)
    for b in range(B):
        for co in range(Cout):
            for l in range(L):
                h[b, co, l] = np.sum(x_pad[b, :, l:l + 3] * conv_w[co]) + conv_b[co]
    h = np.maximum(h, 0.0)
    flat = h.reshape(B, -1)                  # channel-major flatten, like x.view(B, -1)
    z1 = np.maximum(flat @ fc1_w.T + fc1_b, 0.0)
    z2 = np.maximum(z1 @ fc2_w.T + fc2_b, 0.0)
    return z2 @ out_w.T + out_b


if __name__ == "__main__":
    B, input_features, sequence_length, num_classes = 2, 4, 5, 3

    key = jax.random.PRNGKey(0)
    k_x, k_p = jax.random.split(key)
    x = jax.random.normal(k_x, (B, input_features, sequence_length), jnp.float32)
    kernel_params, torch_params = init_params(k_p, input_features,
                                              sequence_length, num_classes)

    out = delivery_notification_cnn(x, kernel_params, num_classes)
    out = jax.block_until_ready(out)

    ref = torch_semantics_reference(x, torch_params)
    out_np = np.asarray(out, np.float32)
    assert out.shape == (B, num_classes)
    # bf16 matmul inputs + bf16 output store vs an all-f32 reference: ~2e-2 tol.
    assert np.allclose(out_np, ref, rtol=2e-2, atol=2e-2), (
        f"mismatch: max abs err {np.max(np.abs(out_np - ref))}")

    print("KERNEL_OK")
</pallas_src>

<mosaic_0001>
module attributes {stable_mosaic.version = 11 : i64} {
  func.func @_delivery_cnn_kernel(%arg0: i32, %arg1: memref<2x20xf32, #tpu.memory_space<vmem>>, %arg2: memref<20x160xbf16, #tpu.memory_space<vmem>>, %arg3: memref<1x160xf32, #tpu.memory_space<vmem>>, %arg4: memref<160x50xbf16, #tpu.memory_space<vmem>>, %arg5: memref<1x50xf32, #tpu.memory_space<vmem>>, %arg6: memref<50x50xbf16, #tpu.memory_space<vmem>>, %arg7: memref<1x50xf32, #tpu.memory_space<vmem>>, %arg8: memref<50x128xbf16, #tpu.memory_space<vmem>>, %arg9: memref<1x128xf32, #tpu.memory_space<vmem>>, %arg10: memref<2x128xbf16, #tpu.memory_space<vmem>>) attributes {dimension_semantics = [#tpu.dimension_semantics<parallel>], iteration_bounds = array<i64: 1>, scalar_prefetch = 0 : i64, scratch_operands = 0 : i64, tpu.core_type = #tpu.core_type<tc>, window_params = [{transform_indices = @transform_0, window_bounds = array<i64: 2, 20>}, {pipeline_mode = #tpu.pipeline_mode<synchronous>, transform_indices = @transform_1, window_bounds = array<i64: 20, 160>}, {pipeline_mode = #tpu.pipeline_mode<synchronous>, transform_indices = @transform_2, window_bounds = array<i64: 1, 160>}, {pipeline_mode = #tpu.pipeline_mode<synchronous>, transform_indices = @transform_3, window_bounds = array<i64: 160, 50>}, {pipeline_mode = #tpu.pipeline_mode<synchronous>, transform_indices = @transform_4, window_bounds = array<i64: 1, 50>}, {pipeline_mode = #tpu.pipeline_mode<synchronous>, transform_indices = @transform_5, window_bounds = array<i64: 50, 50>}, {pipeline_mode = #tpu.pipeline_mode<synchronous>, transform_indices = @transform_6, window_bounds = array<i64: 1, 50>}, {pipeline_mode = #tpu.pipeline_mode<synchronous>, transform_indices = @transform_7, window_bounds = array<i64: 50, 128>}, {pipeline_mode = #tpu.pipeline_mode<synchronous>, transform_indices = @transform_8, window_bounds = array<i64: 1, 128>}, {transform_indices = @transform_9, window_bounds = array<i64: 2, 128>}]} {
    %c0 = arith.constant 0 : index
    %c0_0 = arith.constant 0 : index
    %0 = vector.load %arg1[%c0, %c0_0] : memref<2x20xf32, #tpu.memory_space<vmem>>, vector<2x20xf32>
    %1 = arith.truncf %0 : vector<2x20xf32> to vector<2x20xbf16>
    %c0_1 = arith.constant 0 : index
    %c0_2 = arith.constant 0 : index
    %2 = vector.load %arg2[%c0_1, %c0_2] : memref<20x160xbf16, #tpu.memory_space<vmem>>, vector<20x160xbf16>
    %cst = arith.constant dense<0.000000e+00> : vector<2x160xf32>
    %3 = tpu.matmul %1, %2, %cst {dimension_numbers = #tpu.dot_dimension_numbers<[1], [0], [0], [1], [0, 0, 1, 1], [], []>} : vector<2x20xbf16>, vector<20x160xbf16>, vector<2x160xf32> -> vector<2x160xf32>
    %c0_3 = arith.constant 0 : index
    %c0_4 = arith.constant 0 : index
    %4 = vector.load %arg3[%c0_3, %c0_4] : memref<1x160xf32, #tpu.memory_space<vmem>>, vector<1x160xf32>
    %5 = vector.broadcast %4 : vector<1x160xf32> to vector<2x160xf32>
    %6 = arith.addf %3, %5 : vector<2x160xf32>
    %cst_5 = arith.constant 0.000000e+00 : f32
    %7 = vector.broadcast %cst_5 : f32 to vector<2x160xf32>
    %8 = arith.maximumf %6, %7 : vector<2x160xf32>
    %9 = arith.truncf %8 : vector<2x160xf32> to vector<2x160xbf16>
    %c0_6 = arith.constant 0 : index
    %c0_7 = arith.constant 0 : index
    %10 = vector.load %arg4[%c0_6, %c0_7] : memref<160x50xbf16, #tpu.memory_space<vmem>>, vector<160x50xbf16>
    %cst_8 = arith.constant dense<0.000000e+00> : vector<2x50xf32>
    %11 = tpu.matmul %9, %10, %cst_8 {dimension_numbers = #tpu.dot_dimension_numbers<[1], [0], [0], [1], [0, 0, 1, 1], [], []>} : vector<2x160xbf16>, vector<160x50xbf16>, vector<2x50xf32> -> vector<2x50xf32>
    %c0_9 = arith.constant 0 : index
    %c0_10 = arith.constant 0 : index
    %12 = vector.load %arg5[%c0_9, %c0_10] : memref<1x50xf32, #tpu.memory_space<vmem>>, vector<1x50xf32>
    %13 = vector.broadcast %12 : vector<1x50xf32> to vector<2x50xf32>
    %14 = arith.addf %11, %13 : vector<2x50xf32>
    %cst_11 = arith.constant 0.000000e+00 : f32
    %15 = vector.broadcast %cst_11 : f32 to vector<2x50xf32>
    %16 = arith.maximumf %14, %15 : vector<2x50xf32>
    %17 = arith.truncf %16 : vector<2x50xf32> to vector<2x50xbf16>
    %c0_12 = arith.constant 0 : index
    %c0_13 = arith.constant 0 : index
    %18 = vector.load %arg6[%c0_12, %c0_13] : memref<50x50xbf16, #tpu.memory_space<vmem>>, vector<50x50xbf16>
    %cst_14 = arith.constant dense<0.000000e+00> : vector<2x50xf32>
    %19 = tpu.matmul %17, %18, %cst_14 {dimension_numbers = #tpu.dot_dimension_numbers<[1], [0], [0], [1], [0, 0, 1, 1], [], []>} : vector<2x50xbf16>, vector<50x50xbf16>, vector<2x50xf32> -> vector<2x50xf32>
    %c0_15 = arith.constant 0 : index
    %c0_16 = arith.constant 0 : index
    %20 = vector.load %arg7[%c0_15, %c0_16] : memref<1x50xf32, #tpu.memory_space<vmem>>, vector<1x50xf32>
    %21 = vector.broadcast %20 : vector<1x50xf32> to vector<2x50xf32>
    %22 = arith.addf %19, %21 : vector<2x50xf32>
    %cst_17 = arith.constant 0.000000e+00 : f32
    %23 = vector.broadcast %cst_17 : f32 to vector<2x50xf32>
    %24 = arith.maximumf %22, %23 : vector<2x50xf32>
    %25 = arith.truncf %24 : vector<2x50xf32> to vector<2x50xbf16>
    %c0_18 = arith.constant 0 : index
    %c0_19 = arith.constant 0 : index
    %26 = vector.load %arg8[%c0_18, %c0_19] : memref<50x128xbf16, #tpu.memory_space<vmem>>, vector<50x128xbf16>
    %cst_20 = arith.constant dense<0.000000e+00> : vector<2x128xf32>
    %27 = tpu.matmul %25, %26, %cst_20 {dimension_numbers = #tpu.dot_dimension_numbers<[1], [0], [0], [1], [0, 0, 1, 1], [], []>} : vector<2x50xbf16>, vector<50x128xbf16>, vector<2x128xf32> -> vector<2x128xf32>
    %c0_21 = arith.constant 0 : index
    %c0_22 = arith.constant 0 : index
    %28 = vector.load %arg9[%c0_21, %c0_22] : memref<1x128xf32, #tpu.memory_space<vmem>>, vector<1x128xf32>
    %29 = vector.broadcast %28 : vector<1x128xf32> to vector<2x128xf32>
    %30 = arith.addf %27, %29 : vector<2x128xf32>
    %31 = arith.truncf %30 : vector<2x128xf32> to vector<2x128xbf16>
    %c0_23 = arith.constant 0 : index
    %c0_24 = arith.constant 0 : index
    %32 = vector.load %arg10[%c0_23, %c0_24] : memref<2x128xbf16, #tpu.memory_space<vmem>>, vector<2x128xbf16>
    tpu.vector_store %arg10[%c0_23, %c0_24], %31 {strides = array<i32>} : memref<2x128xbf16, #tpu.memory_space<vmem>>, vector<2x128xbf16>,
    return
  }
  func.func @transform_0(%arg0: i32) -> (i32, i32) {
    %c0_i32 = arith.constant 0 : i32
    %c0_i32_0 = arith.constant 0 : i32
    return %arg0, %c0_i32 : i32, i32
  }
  func.func @transform_1(%arg0: i32) -> (i32, i32) {
    %c0_i32 = arith.constant 0 : i32
    %c0_i32_0 = arith.constant 0 : i32
    %c0_i32_1 = arith.constant 0 : i32
    return %c0_i32, %c0_i32_0 : i32, i32
  }
  func.func @transform_2(%arg0: i32) -> (i32, i32) {
    %c0_i32 = arith.constant 0 : i32
    %c0_i32_0 = arith.constant 0 : i32
    %c0_i32_1 = arith.constant 0 : i32
    return %c0_i32, %c0_i32_0 : i32, i32
  }
  func.func @transform_3(%arg0: i32) -> (i32, i32) {
    %c0_i32 = arith.constant 0 : i32
    %c0_i32_0 = arith.constant 0 : i32
    %c0_i32_1 = arith.constant 0 : i32
    return %c0_i32, %c0_i32_0 : i32, i32
  }
  func.func @transform_4(%arg0: i32) -> (i32, i32) {
    %c0_i32 = arith.constant 0 : i32
    %c0_i32_0 = arith.constant 0 : i32
    %c0_i32_1 = arith.constant 0 : i32
    return %c0_i32, %c0_i32_0 : i32, i32
  }
  func.func @transform_5(%arg0: i32) -> (i32, i32) {
    %c0_i32 = arith.constant 0 : i32
    %c0_i32_0 = arith.constant 0 : i32
    %c0_i32_1 = arith.constant 0 : i32
    return %c0_i32, %c0_i32_0 : i32, i32
  }
  func.func @transform_6(%arg0: i32) -> (i32, i32) {
    %c0_i32 = arith.constant 0 : i32
    %c0_i32_0 = arith.constant 0 : i32
    %c0_i32_1 = arith.constant 0 : i32
    return %c0_i32, %c0_i32_0 : i32, i32
  }
  func.func @transform_7(%arg0: i32) -> (i32, i32) {
    %c0_i32 = arith.constant 0 : i32
    %c0_i32_0 = arith.constant 0 : i32
    %c0_i32_1 = arith.constant 0 : i32
    return %c0_i32, %c0_i32_0 : i32, i32
  }
  func.func @transform_8(%arg0: i32) -> (i32, i32) {
    %c0_i32 = arith.constant 0 : i32
    %c0_i32_0 = arith.constant 0 : i32
    %c0_i32_1 = arith.constant 0 : i32
    return %c0_i32, %c0_i32_0 : i32, i32
  }
  func.func @transform_9(%arg0: i32) -> (i32, i32) {
    %c0_i32 = arith.constant 0 : i32
    %c0_i32_0 = arith.constant 0 : i32
    return %arg0, %c0_i32 : i32, i32
  }
}

</mosaic_0001>

<llo_original>
// kernel: tpu_custom_call.1
$region0: #{tpu_custom_call.1}
  #allocation0 [shape = 'u32[]', space=smem, size = 0x4, offset = 0x4, fixed_abs, tag = 'smem constant byte address 0x4 - core index']
  #allocation1 [shape = 'u32[144,128]{1,0:T(1,128)}', space=vmem, size = 0x12000, scoped, tag = 'internal scratch']
  %s0 = inlined_call_operand.vmem [shape: f32[2,20], index: 0, kind: input, shape index: {}]
  %s1 = inlined_call_operand.vmem [shape: bf16[20,160], index: 1, kind: input, shape index: {}]
  %s2 = inlined_call_operand.vmem [shape: f32[1,160], index: 2, kind: input, shape index: {}]
  %s3 = inlined_call_operand.vmem [shape: bf16[160,50], index: 3, kind: input, shape index: {}]
  %s4 = inlined_call_operand.vmem [shape: f32[1,50], index: 4, kind: input, shape index: {}]
  %s5 = inlined_call_operand.vmem [shape: bf16[50,50], index: 5, kind: input, shape index: {}]
  %s6 = inlined_call_operand.vmem [shape: f32[1,50], index: 6, kind: input, shape index: {}]
  %s7 = inlined_call_operand.vmem [shape: bf16[50,128], index: 7, kind: input, shape index: {}]
  %s8 = inlined_call_operand.vmem [shape: f32[1,128], index: 8, kind: input, shape index: {}]
  %s9 = inlined_call_operand.hbm [shape: bf16[2,128], index: 9, kind: output, shape index: {}]
  %s10 = sld [smem:[#allocation0]]
  $region46: #{tpu_custom_call.1} parent=0
    _
  %s12 = ssub.s32 1, %s10
  %s13 = scalar_select 0, %s12, %s10
  $region1: #{tpu_custom_call.1} parent=0
    #allocation2 [shape = 'u8[512]{0}', space=vmem, size = 0x400, scoped, tag = 'output window, operand 0, single buffered']
    #allocation3 [shape = 's32[1]{0}', space=sflag, size = 0x4, scoped, tag = 'scoped memory for tpu_custom_call.1']
    %14 = vsyncpa [#allocation3], 0
    // Predicated region
    $region2: #{tpu_custom_call.1} parent=1 // pred_check
      _
    $region3: #{tpu_custom_call.1} parent=1 // pred_check_branch
      %16 = sbr.rel (0) target = $region5
    $region4: #{tpu_custom_call.1} parent=1 // pred_region
      _
    $region5: #{tpu_custom_call.1} parent=1 // pred_fallthru
      _
    // Predicated region
    $region6: #{tpu_custom_call.1} parent=1 // pred_check
      _
    $region7: #{tpu_custom_call.1} parent=1 // pred_check_branch
      %18 = sbr.rel (0) target = $region9
    $region8: #{tpu_custom_call.1} parent=1 // pred_region
      _
    $region9: #{tpu_custom_call.1} parent=1 // pred_fallthru
      _
    // Predicated region
    $region10: #{tpu_custom_call.1} parent=1 // pred_check
      _
    $region11: #{tpu_custom_call.1} parent=1 // pred_check_branch
      %20 = sbr.rel (0) target = $region13
    $region12: #{tpu_custom_call.1} parent=1 // pred_region
      _
    $region13: #{tpu_custom_call.1} parent=1 // pred_fallthru
      _
    // Predicated region
    $region14: #{tpu_custom_call.1} parent=1 // pred_check
      _
    $region15: #{tpu_custom_call.1} parent=1 // pred_check_branch
      %22 = sbr.rel (0) target = $region17
    $region16: #{tpu_custom_call.1} parent=1 // pred_region
      _
    $region17: #{tpu_custom_call.1} parent=1 // pred_fallthru
      _
    // Predicated region
    $region18: #{tpu_custom_call.1} parent=1 // pred_check
      _
    $region19: #{tpu_custom_call.1} parent=1 // pred_check_branch
      %24 = sbr.rel (0) target = $region21
    $region20: #{tpu_custom_call.1} parent=1 // pred_region
      _
    $region21: #{tpu_custom_call.1} parent=1 // pred_fallthru
      _
    // Predicated region
    $region22: #{tpu_custom_call.1} parent=1 // pred_check
      _
    $region23: #{tpu_custom_call.1} parent=1 // pred_check_branch
      %26 = sbr.rel (0) target = $region25
    $region24: #{tpu_custom_call.1} parent=1 // pred_region
      _
    $region25: #{tpu_custom_call.1} parent=1 // pred_fallthru
      _
    // Predicated region
    $region26: #{tpu_custom_call.1} parent=1 // pred_check
      _
    $region27: #{tpu_custom_call.1} parent=1 // pred_check_branch
      %28 = sbr.rel (0) target = $region29
    $region28: #{tpu_custom_call.1} parent=1 // pred_region
      _
    $region29: #{tpu_custom_call.1} parent=1 // pred_fallthru
      _
    // Predicated region
    $region30: #{tpu_custom_call.1} parent=1 // pred_check
      _
    $region31: #{tpu_custom_call.1} parent=1 // pred_check_branch
      %30 = sbr.rel (0) target = $region33
    $region32: #{tpu_custom_call.1} parent=1 // pred_region
      _
    $region33: #{tpu_custom_call.1} parent=1 // pred_fallthru
      _
    // Predicated region
    $region34: #{tpu_custom_call.1} parent=1 // pred_check
      _
    $region35: #{tpu_custom_call.1} parent=1 // pred_check_branch
      %32 = sbr.rel (0) target = $region37
    $region36: #{tpu_custom_call.1} parent=1 // pred_region
      _
    $region37: #{tpu_custom_call.1} parent=1 // pred_fallthru
      _
    %v34 = vld [vmem:[%s0] sm:$0x3]
    %v35 = vpack.c.bf16 %v34, %v34
    %v36 = vld [vmem:[%s1] sm:$0xff]
    %v37 = vld [vmem:[%s1 + $0x8] sm:$0xff]
    %v38 = vld [vmem:[%s1 + $0x10] sm:$0x33]
    %v39 = vld [vmem:[%s2] sm:$0x3]
    %v41 = vlaneseq
    %v42 = vshrl.u32 %v41, 7
    %v43 = vsub.s32 0, %v42
    %v44 = vrot.slane %v39, %v43
    %v45 = vlaneseq
    %v46 = vshrl.u32 %v45, 7
    %v47 = vsub.s32 1, %v46
    %v48 = vrot.slane %v39, %v47
    %v54 = vunpack.c.l.b16 %v36
    %v55 = vunpack.c.h.b16 %v36
    %v56 = vunpack.c.l.b16 %v37
    %v57 = vunpack.c.h.b16 %v37
    %v58 = vunpack.c.l.b16 %v38
    %v59 = vunpack.c.h.b16 %v38
    %v60 = vpack.c.b16 %v56, %v54
    %v61 = vpack.c.b16 %v57, %v55
    %v62 = vpack.c.b16 %v58, %v58
    %v63 = vpack.c.b16 %v59, %v59
    %vm66 = vcmask 162816
    %v68 = vsel %vm66, %v35, 0
    %vm70 = vcmask 1041408
    %v72 = vsel %vm70, %v62, 0
    %v75 = vsel %vm70, %v63, 0
    %77 = vmatprep.subr.bf16.mxu0 0
    %78 = vmatpush1.bf16.msra.mxu0 0
    %79 = vmatprep.subr.bf16.mxu0 0
    %80 = vmatpush1.bf16.msra.mxu0 0
    %81 = vmatprep.subr.bf16.mxu0 0
    %82 = vmatpush1.bf16.msra.mxu0 0
    %83 = vmatprep.subr.bf16.mxu0 0
    %84 = vmatpush1.bf16.msra.mxu0 0
    %85 = vmatprep.subr.bf16.mxu0 0
    %86 = vmatpush1.bf16.msra.mxu0 0
    %87 = vmatprep.subr.bf16.mxu0 0
    %88 = vmatpush1.bf16.msra.mxu0 0
    %89 = vmatprep.subr.bf16.mxu0 %v75
    %90 = vmatpush1.bf16.msra.mxu0 %v72
    %91 = vmatprep.subr.bf16.mxu0 %v61
    %92 = vmatpush1.bf16.msra.mxu0 %v60
    %93 = vmatprep.subr.bf16.mxu0 0
    %94 = vmatpush2.bf16.msra.mxu0 0
    %95 = vmatprep.subr.bf16.mxu0 0
    %96 = vmatpush2.bf16.msra.mxu0 0
    %97 = vmatprep.subr.bf16.mxu0 0
    %98 = vmatpush2.bf16.msra.mxu0 0
    %99 = vmatprep.subr.bf16.mxu0 0
    %100 = vmatpush2.bf16.msra.mxu0 0
    %101 = vmatprep.subr.bf16.mxu0 0
    %102 = vmatpush2.bf16.msra.mxu0 0
    %103 = vmatprep.subr.bf16.mxu0 0
    %104 = vmatpush2.bf16.msra.mxu0 0
    %105 = vmatprep.subr.bf16.mxu0 0
    %106 = vmatpush2.bf16.msra.mxu0 0
    %107 = vmatprep.subr.bf16.mxu0 0
    %108 = vmatpush2.bf16.msra.mxu0 0
    %109 = vmatprep.mubr.bf16.mxu0 0
    %110 = vmatmul.mubr.bf16.gmra.mxu0 %v68
    %v111 = vpop.f32.mrf.mxu0
    %v112 = vadd.f32 %v44, %v111
    %v113 = vpop.f32.mrf.mxu0
    %v114 = vadd.f32 %v48, %v113
    %v115 = vpop.f32.mrf.mxu0
    %v116 = vpop.f32.mrf.mxu0
    %117 = vdwg.mxu0
    %v118 = vmax.f32 %v112, 0.0
    %v119 = vmax.f32 %v114, 0.0
    %v120 = vpack.c.bf16 %v118, %v118
    %v121 = vpack.c.bf16 %v119, %v119
    %v122 = vld [vmem:[%s3] sm:$0xf]
    %v123 = vld [vmem:[%s3 + $0x4] sm:$0xf]
    %v124 = vld [vmem:[%s3 + $0x8] sm:$0xf]
    %v125 = vld [vmem:[%s3 + $0xc] sm:$0xf]
    %v126 = vld [vmem:[%s3 + $0x10] sm:$0xf]
    %v127 = vld [vmem:[%s3 + $0x14] sm:$0xf]
    %v128 = vld [vmem:[%s3 + $0x18] sm:$0xf]
    %v129 = vld [vmem:[%s3 + $0x1c] sm:$0xf]
    %v130 = vld [vmem:[%s3 + $0x20] sm:$0xf]
    %v131 = vld [vmem:[%s3 + $0x24] sm:$0xf]
    %v132 = vld [vmem:[%s3 + $0x28] sm:$0xf]
    %v133 = vld [vmem:[%s3 + $0x2c] sm:$0xf]
    %v134 = vld [vmem:[%s3 + $0x30] sm:$0xf]
    %v135 = vld [vmem:[%s3 + $0x34] sm:$0xf]
    %v136 = vld [vmem:[%s3 + $0x38] sm:$0xf]
    %v137 = vld [vmem:[%s3 + $0x3c] sm:$0xf]
    %v138 = vld [vmem:[%s3 + $0x40] sm:$0xf]
    %v139 = vld [vmem:[%s3 + $0x44] sm:$0xf]
    %v140 = vld [vmem:[%s3 + $0x48] sm:$0xf]
    %v141 = vld [vmem:[%s3 + $0x4c] sm:$0xf]
    %v142 = vld [vmem:[%s4] sm:$0x1]
    %v144 = vlaneseq
    %v145 = vshrl.u32 %v144, 7
    %v146 = vsub.s32 0, %v145
    %v147 = vrot.slane %v142, %v146
    %v169 = vunpack.c.l.b16 %v122
    %v170 = vunpack.c.l.b16 %v123
    %v171 = vunpack.c.l.b16 %v124
    %v172 = vunpack.c.l.b16 %v125
    %v173 = vunpack.c.l.b16 %v126
    %v174 = vunpack.c.l.b16 %v127
    %v175 = vunpack.c.l.b16 %v128
    %v176 = vunpack.c.l.b16 %v129
    %v177 = vunpack.c.l.b16 %v130
    %v178 = vunpack.c.l.b16 %v131
    %v179 = vunpack.c.l.b16 %v132
    %v180 = vunpack.c.l.b16 %v133
    %v181 = vunpack.c.l.b16 %v134
    %v182 = vunpack.c.l.b16 %v135
    %v183 = vunpack.c.l.b16 %v136
    %v184 = vunpack.c.l.b16 %v137
    %v185 = vunpack.c.l.b16 %v138
    %v186 = vunpack.c.l.b16 %v139
    %v187 = vunpack.c.l.b16 %v140
    %v188 = vunpack.c.l.b16 %v141
    %v189 = vpack.c.b16 %v170, %v169
    %v190 = vpack.c.b16 %v172, %v171
    %v191 = vpack.c.b16 %v174, %v173
    %v192 = vpack.c.b16 %v176, %v175
    %v193 = vpack.c.b16 %v178, %v177
    %v194 = vpack.c.b16 %v180, %v179
    %v195 = vpack.c.b16 %v182, %v181
    %v196 = vpack.c.b16 %v184, %v183
    %v197 = vpack.c.b16 %v186, %v185
    %v198 = vpack.c.b16 %v188, %v187
    %vm209 = vcmask 261120
    %v211 = vsel %vm209, %v121, 0
    %213 = vmatprep.subr.bf16.mxu0 0
    %214 = vmatpush1.bf16.msra.mxu0 %v196
    %215 = vmatprep.subr.bf16.mxu0 0
    %216 = vmatpush1.bf16.msra.mxu0 %v195
    %217 = vmatprep.subr.bf16.mxu0 0
    %218 = vmatpush1.bf16.msra.mxu0 %v194
    %219 = vmatprep.subr.bf16.mxu0 0
    %220 = vmatpush1.bf16.msra.mxu0 %v193
    %221 = vmatprep.subr.bf16.mxu0 0
    %222 = vmatpush1.bf16.msra.mxu0 %v192
    %223 = vmatprep.subr.bf16.mxu0 0
    %224 = vmatpush1.bf16.msra.mxu0 %v191
    %225 = vmatprep.subr.bf16.mxu0 0
    %226 = vmatpush1.bf16.msra.mxu0 %v190
    %227 = vmatprep.subr.bf16.mxu0 0
    %228 = vmatpush1.bf16.msra.mxu0 %v189
    %229 = vmatprep.subr.bf16.mxu0 0
    %230 = vmatpush2.bf16.msra.mxu0 0
    %231 = vmatprep.subr.bf16.mxu0 0
    %232 = vmatpush2.bf16.msra.mxu0 0
    %233 = vmatprep.subr.bf16.mxu0 0
    %234 = vmatpush2.bf16.msra.mxu0 0
    %235 = vmatprep.subr.bf16.mxu0 0
    %236 = vmatpush2.bf16.msra.mxu0 0
    %237 = vmatprep.subr.bf16.mxu0 0
    %238 = vmatpush2.bf16.msra.mxu0 0
    %239 = vmatprep.subr.bf16.mxu0 0
    %240 = vmatpush2.bf16.msra.mxu0 0
    %241 = vmatprep.subr.bf16.mxu0 0
    %242 = vmatpush2.bf16.msra.mxu0 %v198
    %243 = vmatprep.subr.bf16.mxu0 0
    %244 = vmatpush2.bf16.msra.mxu0 %v197
    %245 = vmatprep.mubr.bf16.mxu0 %v211
    %246 = vmatmul.mubr.bf16.gmra.mxu0 %v120
    %v247 = vpop.f32.mrf.mxu0
    %v248 = vadd.f32 %v147, %v247
    %v249 = vpop.f32.mrf.mxu0
    %v250 = vpop.f32.mrf.mxu0
    %v251 = vpop.f32.mrf.mxu0
    %252 = vdwg.mxu0
    %v253 = vmax.f32 %v248, 0.0
    %v254 = vpack.c.bf16 %v253, %v253
    %v255 = vld [vmem:[%s5] sm:$0xf]
    %v256 = vld [vmem:[%s5 + $0x4] sm:$0xf]
    %v257 = vld [vmem:[%s5 + $0x8] sm:$0xf]
    %v258 = vld [vmem:[%s5 + $0xc] sm:$0xf]
    %v259 = vld [vmem:[%s5 + $0x10] sm:$0xf]
    %v260 = vld [vmem:[%s5 + $0x14] sm:$0xf]
    %v261 = vld [vmem:[%s5 + $0x18] sm:$0x1]
    %v262 = vld [vmem:[%s6] sm:$0x1]
    %v264 = vlaneseq
    %v265 = vshrl.u32 %v264, 7
    %v266 = vsub.s32 0, %v265
    %v267 = vrot.slane %v262, %v266
    %v276 = vunpack.c.l.b16 %v255
    %v277 = vunpack.c.l.b16 %v256
    %v278 = vunpack.c.l.b16 %v257
    %v279 = vunpack.c.l.b16 %v258
    %v280 = vunpack.c.l.b16 %v259
    %v281 = vunpack.c.l.b16 %v260
    %v282 = vunpack.c.l.b16 %v261
    %v283 = vpack.c.b16 %v277, %v276
    %v284 = vpack.c.b16 %v279, %v278
    %v285 = vpack.c.b16 %v281, %v280
    %v286 = vpack.c.b16 %v282, %v282
    %vm290 = vcmask 408576
    %v292 = vsel %vm290, %v254, 0
    %vm294 = vcmask 1040384
    %v296 = vsel %vm294, %v286, 0
    %298 = vmatprep.subr.bf16.mxu0 0
    %299 = vmatpush1.bf16.msra.mxu0 0
    %300 = vmatprep.subr.bf16.mxu0 0
    %301 = vmatpush1.bf16.msra.mxu0 0
    %302 = vmatprep.subr.bf16.mxu0 0
    %303 = vmatpush1.bf16.msra.mxu0 0
    %304 = vmatprep.subr.bf16.mxu0 0
    %305 = vmatpush1.bf16.msra.mxu0 0
    %306 = vmatprep.subr.bf16.mxu0 0
    %307 = vmatpush1.bf16.msra.mxu0 %v296
    %308 = vmatprep.subr.bf16.mxu0 0
    %309 = vmatpush1.bf16.msra.mxu0 %v285
    %310 = vmatprep.subr.bf16.mxu0 0
    %311 = vmatpush1.bf16.msra.mxu0 %v284
    %312 = vmatprep.subr.bf16.mxu0 0
    %313 = vmatpush1.bf16.msra.mxu0 %v283
    %314 = vmatprep.subr.bf16.mxu0 0
    %315 = vmatpush2.bf16.msra.mxu0 0
    %316 = vmatprep.subr.bf16.mxu0 0
    %317 = vmatpush2.bf16.msra.mxu0 0
    %318 = vmatprep.subr.bf16.mxu0 0
    %319 = vmatpush2.bf16.msra.mxu0 0
    %320 = vmatprep.subr.bf16.mxu0 0
    %321 = vmatpush2.bf16.msra.mxu0 0
    %322 = vmatprep.subr.bf16.mxu0 0
    %323 = vmatpush2.bf16.msra.mxu0 0
    %324 = vmatprep.subr.bf16.mxu0 0
    %325 = vmatpush2.bf16.msra.mxu0 0
    %326 = vmatprep.subr.bf16.mxu0 0
    %327 = vmatpush2.bf16.msra.mxu0 0
    %328 = vmatprep.subr.bf16.mxu0 0
    %329 = vmatpush2.bf16.msra.mxu0 0
    %330 = vmatprep.mubr.bf16.mxu0 0
    %331 = vmatmul.mubr.bf16.gmra.mxu0 %v292
    %v332 = vpop.f32.mrf.mxu0
    %v333 = vadd.f32 %v267, %v332
    %v334 = vpop.f32.mrf.mxu0
    %v335 = vpop.f32.mrf.mxu0
    %v336 = vpop.f32.mrf.mxu0
    %337 = vdwg.mxu0
    %v338 = vmax.f32 %v333, 0.0
    %v339 = vpack.c.bf16 %v338, %v338
    %v340 = vld [vmem:[%s7] sm:$0xf]
    %v341 = vld [vmem:[%s7 + $0x4] sm:$0xf]
    %v342 = vld [vmem:[%s7 + $0x8] sm:$0xf]
    %v343 = vld [vmem:[%s7 + $0xc] sm:$0xf]
    %v344 = vld [vmem:[%s7 + $0x10] sm:$0xf]
    %v345 = vld [vmem:[%s7 + $0x14] sm:$0xf]
    %v346 = vld [vmem:[%s7 + $0x18] sm:$0x1]
    %v347 = vld [vmem:[%s8] sm:$0x1]
    %v349 = vlaneseq
    %v350 = vshrl.u32 %v349, 7
    %v351 = vsub.s32 0, %v350
    %v352 = vrot.slane %v347, %v351
    %v361 = vunpack.c.l.b16 %v340
    %v362 = vunpack.c.l.b16 %v341
    %v363 = vunpack.c.l.b16 %v342
    %v364 = vunpack.c.l.b16 %v343
    %v365 = vunpack.c.l.b16 %v344
    %v366 = vunpack.c.l.b16 %v345
    %v367 = vunpack.c.l.b16 %v346
    %v368 = vpack.c.b16 %v362, %v361
    %v369 = vpack.c.b16 %v364, %v363
    %v370 = vpack.c.b16 %v366, %v365
    %v371 = vpack.c.b16 %v367, %v367
    %v376 = vsel %vm290, %v339, 0
    %v379 = vsel %vm294, %v371, 0
    %381 = vmatprep.subr.bf16.mxu0 0
    %382 = vmatpush1.bf16.msra.mxu0 0
    %383 = vmatprep.subr.bf16.mxu0 0
    %384 = vmatpush1.bf16.msra.mxu0 0
    %385 = vmatprep.subr.bf16.mxu0 0
    %386 = vmatpush1.bf16.msra.mxu0 0
    %387 = vmatprep.subr.bf16.mxu0 0
    %388 = vmatpush1.bf16.msra.mxu0 0
    %389 = vmatprep.subr.bf16.mxu0 0
    %390 = vmatpush1.bf16.msra.mxu0 %v379
    %391 = vmatprep.subr.bf16.mxu0 0
    %392 = vmatpush1.bf16.msra.mxu0 %v370
    %393 = vmatprep.subr.bf16.mxu0 0
    %394 = vmatpush1.bf16.msra.mxu0 %v369
    %395 = vmatprep.subr.bf16.mxu0 0
    %396 = vmatpush1.bf16.msra.mxu0 %v368
    %397 = vmatprep.subr.bf16.mxu0 0
    %398 = vmatpush2.bf16.msra.mxu0 0
    %399 = vmatprep.subr.bf16.mxu0 0
    %400 = vmatpush2.bf16.msra.mxu0 0
    %401 = vmatprep.subr.bf16.mxu0 0
    %402 = vmatpush2.bf16.msra.mxu0 0
    %403 = vmatprep.subr.bf16.mxu0 0
    %404 = vmatpush2.bf16.msra.mxu0 0
    %405 = vmatprep.subr.bf16.mxu0 0
    %406 = vmatpush2.bf16.msra.mxu0 0
    %407 = vmatprep.subr.bf16.mxu0 0
    %408 = vmatpush2.bf16.msra.mxu0 0
    %409 = vmatprep.subr.bf16.mxu0 0
    %410 = vmatpush2.bf16.msra.mxu0 0
    %411 = vmatprep.subr.bf16.mxu0 0
    %412 = vmatpush2.bf16.msra.mxu0 0
    %413 = vmatprep.mubr.bf16.mxu0 0
    %414 = vmatmul.mubr.bf16.gmra.mxu0 %v376
    %v415 = vpop.f32.mrf.mxu0
    %v416 = vadd.f32 %v352, %v415
    %v417 = vpop.f32.mrf.mxu0
    %v418 = vpop.f32.mrf.mxu0
    %v419 = vpop.f32.mrf.mxu0
    %420 = vdwg.mxu0
    %v421 = vpack.c.bf16 %v416, %v416
    %422 = vst [vmem:[#allocation2] sm:$0x1] %v421
    // Predicated region
    $region38: #{tpu_custom_call.1} parent=1 // pred_check
      _
    $region39: #{tpu_custom_call.1} parent=1 // pred_check_branch
      %424 = sbr.rel (0) target = $region41
    $region40: #{tpu_custom_call.1} parent=1 // pred_region
      %s426 = ssub.s32 16, 16
      %427 = vsyncadd [#allocation3], %s426
      %s429 = sshll.u32 [#allocation2], 4
      %s430 = int_to_ptr.vmem [resolvable:$true] %s429
      %432 = dma.vmem_to_hbm [thread:$0]  %s430, 16, %s9, [#allocation3]
    $region41: #{tpu_custom_call.1} parent=1 // pred_fallthru
      _
    // Predicated region
    $region42: #{tpu_custom_call.1} parent=1 // pred_check
      _
    $region43: #{tpu_custom_call.1} parent=1 // pred_check_branch
      %434 = sbr.rel (0) target = $region45
    $region44: #{tpu_custom_call.1} parent=1 // pred_region
      %435 = dma.done [#allocation3], 16
    $region45: #{tpu_custom_call.1} parent=1 // pred_fallthru
      _
    %436 = vsyncpa [#allocation3], 1

</llo_original>
